<compile_context>
chip_gen: v7x
topology: tpu7x:2x2x1
jax: 0.10.0
libtpu: 0.0.40
codegen_flags: <defaults>
</compile_context>

<pallas_src>
import numpy as np
import jax
import jax.numpy as jnp
from jax.experimental import pallas as pl
from jax.experimental.pallas import tpu as pltpu

# ---------------- model hyper-parameters (synthetic, deterministic) -----------
STATE_DIM    = 32
HIDDEN_DIM   = 64      # body.feature_dim
ACTION_DIM   = 8
MAX_ACTION   = 1.0
MIN_LOG_STD  = -20.0
MAX_LOG_STD  = 2.0
LOG2         = float(np.log(2.0))
HALF_LOG_2PI = float(0.5 * np.log(2.0 * np.pi))


# ----------------------------- Pallas kernel ---------------------------------
def actor_kernel(x_ref, w1_ref, b1_ref, w2m_ref, b2m_ref, w2s_ref, b2s_ref,
                 eps_ref, out_ref):
    # body: h = relu(x @ W1 + b1)   -- bf16 MXU operands, f32 accumulate
    xb = x_ref[...].astype(jnp.bfloat16)
    h  = jnp.dot(xb, w1_ref[...], preferred_element_type=jnp.float32)
    h  = jnp.maximum(h + b1_ref[...], 0.0)
    hb = h.astype(jnp.bfloat16)

    # fc split into two heads: mu / log_std each start at lane 0 (no lane shuffles).
    mu      = jnp.dot(hb, w2m_ref[...], preferred_element_type=jnp.float32) + b2m_ref[...]
    log_std = jnp.dot(hb, w2s_ref[...], preferred_element_type=jnp.float32) + b2s_ref[...]

    # training branch of the PyTorch forward (rsample + log-prob)
    log_std = jnp.clip(log_std, MIN_LOG_STD, MAX_LOG_STD)
    std     = jnp.exp(log_std)                    # EUP
    eps     = eps_ref[...]
    action  = mu + std * eps                      # rsample()

    # tanh-squash correction element: 2*(log2 - a - softplus(-2a)), stable softplus.
    neg2a    = -2.0 * action
    softplus = jnp.maximum(neg2a, 0.0) + jnp.log1p(jnp.exp(-jnp.abs(neg2a)))
    corr     = 2.0 * (LOG2 - action - softplus)

    # Normal(mu, std).log_prob(action).sum(-1) - sum(corr), fused into ONE reduction.
    # z = (action - mu)/std == eps algebraically -> no divide needed.
    logp = (jnp.sum(-0.5 * eps * eps - log_std - corr, axis=-1, keepdims=True)
            - ACTION_DIM * HALF_LOG_2PI)

    squashed = MAX_ACTION * jnp.tanh(action)

    # Single packed (bm, 2A) store: actions in the first A lanes, logp broadcast after.
    packed = jnp.concatenate(
        [squashed, jnp.broadcast_to(logp, squashed.shape)], axis=-1)
    out_ref[...] = packed.astype(out_ref.dtype)


# ------------------------------- wrapper --------------------------------------
def stochastic_actor_forward(x, params, eps, *, block_b=1024):
    """Training-mode forward. Returns (max_action * tanh(action), logp_action)."""
    B = x.shape[0]
    A = ACTION_DIM
    w1, b1, w2, b2 = params

    # Split the fused (H, 2A) head and pre-cast matmul weights to bf16 for the MXU.
    w1b = w1.astype(jnp.bfloat16)
    w2m = w2[:, :A].astype(jnp.bfloat16)
    w2s = w2[:, A:].astype(jnp.bfloat16)
    b2m = b2[:, :A]
    b2s = b2[:, A:]

    # Row tile: whole batch if small, otherwise 1024-row tiles (multiple of 8;
    # per-tile footprint < 0.5 MiB double-buffered -> way under scoped VMEM).
    bm = B if B <= block_b else block_b
    grid = (pl.cdiv(B, bm),)

    row_spec  = lambda cols: pl.BlockSpec((bm, cols), lambda i: (i, 0))
    full_spec = lambda r, c: pl.BlockSpec((r, c), lambda i: (0, 0))

    packed = pl.pallas_call(
        actor_kernel,
        out_shape=jax.ShapeDtypeStruct((B, 2 * A), jnp.float32),
        grid=grid,
        in_specs=[
            row_spec(STATE_DIM),               # x           (row-blocked)
            full_spec(STATE_DIM, HIDDEN_DIM),  # W1  (bf16, resident)
            full_spec(1, HIDDEN_DIM),          # b1
            full_spec(HIDDEN_DIM, A),          # W2_mu (bf16)
            full_spec(1, A),                   # b2_mu
            full_spec(HIDDEN_DIM, A),          # W2_log_std (bf16)
            full_spec(1, A),                   # b2_log_std
            row_spec(A),                       # eps         (row-blocked)
        ],
        out_specs=row_spec(2 * A),
        compiler_params=pltpu.CompilerParams(
            # batch tiles are independent -> shard across v7x's 2 TensorCores
            dimension_semantics=("parallel",),
        ),
    )(x, w1b, b1, w2m, b2m, w2s, b2s, eps)

    return packed[:, :A], packed[:, A:A + 1]


def init_params(key):
    """Deterministic orthogonal weights / zero biases (mirrors layer_init)."""
    k1, k2 = jax.random.split(key)
    ortho = jax.nn.initializers.orthogonal()
    w1 = ortho(k1, (STATE_DIM, HIDDEN_DIM), jnp.float32)
    b1 = jnp.zeros((1, HIDDEN_DIM), jnp.float32)
    w2 = ortho(k2, (HIDDEN_DIM, 2 * ACTION_DIM), jnp.float32)
    b2 = jnp.zeros((1, 2 * ACTION_DIM), jnp.float32)
    return w1, b1, w2, b2


# ------------------------------ pure-JAX reference -----------------------------
def reference_forward(x, params, eps, *, mxu_dtype=jnp.float32):
    """Module semantics. With mxu_dtype=bfloat16 it mirrors the kernel's mixed
    precision (bf16 MXU operands, f32 accumulate)."""
    w1, b1, w2, b2 = params
    h = jnp.maximum(jnp.dot(x.astype(mxu_dtype), w1.astype(mxu_dtype),
                            preferred_element_type=jnp.float32) + b1, 0.0)
    out = jnp.dot(h.astype(mxu_dtype), w2.astype(mxu_dtype),
                  preferred_element_type=jnp.float32) + b2
    mu, log_std = out[:, :ACTION_DIM], out[:, ACTION_DIM:]
    log_std = jnp.clip(log_std, MIN_LOG_STD, MAX_LOG_STD)
    std = jnp.exp(log_std)
    a = mu + std * eps
    logp = jnp.sum(-0.5 * ((a - mu) / std) ** 2 - log_std
                   - 0.5 * jnp.log(2.0 * jnp.pi), axis=-1, keepdims=True)
    logp -= jnp.sum(2.0 * (LOG2 - a - jax.nn.softplus(-2.0 * a)),
                    axis=-1, keepdims=True)
    return MAX_ACTION * jnp.tanh(a), logp


if __name__ == "__main__":
    key = jax.random.PRNGKey(0)
    kp, kx, ke = jax.random.split(key, 3)
    params = init_params(kp)

    # Small per-step batch and a larger batch that exercises the row grid (2 tiles).
    for B in (8, 2048):
        kxb = jax.random.fold_in(kx, B)
        keb = jax.random.fold_in(ke, B)
        x   = jax.random.normal(kxb, (B, STATE_DIM), jnp.float32)
        eps = jax.random.normal(keb, (B, ACTION_DIM), jnp.float32)

        action, logp = jax.block_until_ready(
            stochastic_actor_forward(x, params, eps))

        # Tight check vs a reference using the same mixed precision as the kernel.
        ref_a, ref_l = reference_forward(x, params, eps, mxu_dtype=jnp.bfloat16)
        np.testing.assert_allclose(np.asarray(action), np.asarray(ref_a),
                                   rtol=1e-3, atol=1e-3)
        np.testing.assert_allclose(np.asarray(logp), np.asarray(ref_l),
                                   rtol=1e-3, atol=1e-2)

        # Loose sanity check vs pure-f32 module semantics (difference = bf16 MXU rounding).
        f32_a, f32_l = reference_forward(x, params, eps)
        np.testing.assert_allclose(np.asarray(action), np.asarray(f32_a),
                                   rtol=5e-2, atol=5e-2)
        np.testing.assert_allclose(np.asarray(logp), np.asarray(f32_l),
                                   rtol=5e-2, atol=5e-1)

    print("KERNEL_OK")
</pallas_src>

<mosaic_0001>
module attributes {stable_mosaic.version = 11 : i64} {
  func.func @actor_kernel(%arg0: i32, %arg1: memref<8x32xf32, #tpu.memory_space<vmem>>, %arg2: memref<32x64xbf16, #tpu.memory_space<vmem>>, %arg3: memref<1x64xf32, #tpu.memory_space<vmem>>, %arg4: memref<64x8xbf16, #tpu.memory_space<vmem>>, %arg5: memref<1x8xf32, #tpu.memory_space<vmem>>, %arg6: memref<64x8xbf16, #tpu.memory_space<vmem>>, %arg7: memref<1x8xf32, #tpu.memory_space<vmem>>, %arg8: memref<8x8xf32, #tpu.memory_space<vmem>>, %arg9: memref<8x16xf32, #tpu.memory_space<vmem>>) attributes {dimension_semantics = [#tpu.dimension_semantics<parallel>], iteration_bounds = array<i64: 1>, scalar_prefetch = 0 : i64, scratch_operands = 0 : i64, tpu.core_type = #tpu.core_type<tc>, window_params = [{transform_indices = @transform_0, window_bounds = array<i64: 8, 32>}, {pipeline_mode = #tpu.pipeline_mode<synchronous>, transform_indices = @transform_1, window_bounds = array<i64: 32, 64>}, {pipeline_mode = #tpu.pipeline_mode<synchronous>, transform_indices = @transform_2, window_bounds = array<i64: 1, 64>}, {pipeline_mode = #tpu.pipeline_mode<synchronous>, transform_indices = @transform_3, window_bounds = array<i64: 64, 8>}, {pipeline_mode = #tpu.pipeline_mode<synchronous>, transform_indices = @transform_4, window_bounds = array<i64: 1, 8>}, {pipeline_mode = #tpu.pipeline_mode<synchronous>, transform_indices = @transform_5, window_bounds = array<i64: 64, 8>}, {pipeline_mode = #tpu.pipeline_mode<synchronous>, transform_indices = @transform_6, window_bounds = array<i64: 1, 8>}, {transform_indices = @transform_7, window_bounds = array<i64: 8, 8>}, {transform_indices = @transform_8, window_bounds = array<i64: 8, 16>}]} {
    %c0 = arith.constant 0 : index
    %c0_0 = arith.constant 0 : index
    %0 = vector.load %arg1[%c0, %c0_0] : memref<8x32xf32, #tpu.memory_space<vmem>>, vector<8x32xf32>
    %1 = arith.truncf %0 : vector<8x32xf32> to vector<8x32xbf16>
    %c0_1 = arith.constant 0 : index
    %c0_2 = arith.constant 0 : index
    %2 = vector.load %arg2[%c0_1, %c0_2] : memref<32x64xbf16, #tpu.memory_space<vmem>>, vector<32x64xbf16>
    %cst = arith.constant dense<0.000000e+00> : vector<8x64xf32>
    %3 = tpu.matmul %1, %2, %cst {dimension_numbers = #tpu.dot_dimension_numbers<[1], [0], [0], [1], [0, 0, 1, 1], [], []>} : vector<8x32xbf16>, vector<32x64xbf16>, vector<8x64xf32> -> vector<8x64xf32>
    %c0_3 = arith.constant 0 : index
    %c0_4 = arith.constant 0 : index
    %4 = vector.load %arg3[%c0_3, %c0_4] : memref<1x64xf32, #tpu.memory_space<vmem>>, vector<1x64xf32>
    %5 = vector.broadcast %4 : vector<1x64xf32> to vector<8x64xf32>
    %6 = arith.addf %3, %5 : vector<8x64xf32>
    %cst_5 = arith.constant 0.000000e+00 : f32
    %7 = vector.broadcast %cst_5 : f32 to vector<8x64xf32>
    %8 = arith.maximumf %6, %7 : vector<8x64xf32>
    %9 = arith.truncf %8 : vector<8x64xf32> to vector<8x64xbf16>
    %c0_6 = arith.constant 0 : index
    %c0_7 = arith.constant 0 : index
    %10 = vector.load %arg4[%c0_6, %c0_7] : memref<64x8xbf16, #tpu.memory_space<vmem>>, vector<64x8xbf16>
    %cst_8 = arith.constant dense<0.000000e+00> : vector<8x8xf32>
    %11 = tpu.matmul %9, %10, %cst_8 {dimension_numbers = #tpu.dot_dimension_numbers<[1], [0], [0], [1], [0, 0, 1, 1], [], []>} : vector<8x64xbf16>, vector<64x8xbf16>, vector<8x8xf32> -> vector<8x8xf32>
    %c0_9 = arith.constant 0 : index
    %c0_10 = arith.constant 0 : index
    %12 = vector.load %arg5[%c0_9, %c0_10] : memref<1x8xf32, #tpu.memory_space<vmem>>, vector<1x8xf32>
    %13 = vector.broadcast %12 : vector<1x8xf32> to vector<8x8xf32>
    %14 = arith.addf %11, %13 : vector<8x8xf32>
    %c0_11 = arith.constant 0 : index
    %c0_12 = arith.constant 0 : index
    %15 = vector.load %arg6[%c0_11, %c0_12] : memref<64x8xbf16, #tpu.memory_space<vmem>>, vector<64x8xbf16>
    %cst_13 = arith.constant dense<0.000000e+00> : vector<8x8xf32>
    %16 = tpu.matmul %9, %15, %cst_13 {dimension_numbers = #tpu.dot_dimension_numbers<[1], [0], [0], [1], [0, 0, 1, 1], [], []>} : vector<8x64xbf16>, vector<64x8xbf16>, vector<8x8xf32> -> vector<8x8xf32>
    %c0_14 = arith.constant 0 : index
    %c0_15 = arith.constant 0 : index
    %17 = vector.load %arg7[%c0_14, %c0_15] : memref<1x8xf32, #tpu.memory_space<vmem>>, vector<1x8xf32>
    %18 = vector.broadcast %17 : vector<1x8xf32> to vector<8x8xf32>
    %19 = arith.addf %16, %18 : vector<8x8xf32>
    %cst_16 = arith.constant -2.000000e+01 : f32
    %cst_17 = arith.constant 2.000000e+00 : f32
    %20 = vector.broadcast %cst_16 : f32 to vector<8x8xf32>
    %21 = arith.maximumf %20, %19 : vector<8x8xf32>
    %22 = vector.broadcast %cst_17 : f32 to vector<8x8xf32>
    %23 = arith.minimumf %22, %21 : vector<8x8xf32>
    %24 = math.exp %23 : vector<8x8xf32>
    %c0_18 = arith.constant 0 : index
    %c0_19 = arith.constant 0 : index
    %25 = vector.load %arg8[%c0_18, %c0_19] : memref<8x8xf32, #tpu.memory_space<vmem>>, vector<8x8xf32>
    %26 = arith.mulf %24, %25 : vector<8x8xf32>
    %27 = arith.addf %14, %26 : vector<8x8xf32>
    %cst_20 = arith.constant -2.000000e+00 : f32
    %28 = vector.broadcast %cst_20 : f32 to vector<8x8xf32>
    %29 = arith.mulf %28, %27 : vector<8x8xf32>
    %cst_21 = arith.constant 0.000000e+00 : f32
    %30 = vector.broadcast %cst_21 : f32 to vector<8x8xf32>
    %31 = arith.maximumf %29, %30 : vector<8x8xf32>
    %32 = math.absf %29 : vector<8x8xf32>
    %cst_22 = arith.constant 0.000000e+00 : f32
    %33 = vector.broadcast %cst_22 : f32 to vector<8x8xf32>
    %34 = arith.subf %33, %32 : vector<8x8xf32>
    %35 = math.exp %34 : vector<8x8xf32>
    %36 = math.log1p %35 : vector<8x8xf32>
    %37 = arith.addf %31, %36 : vector<8x8xf32>
    %cst_23 = arith.constant 0.693147182 : f32
    %38 = vector.broadcast %cst_23 : f32 to vector<8x8xf32>
    %39 = arith.subf %38, %27 : vector<8x8xf32>
    %40 = arith.subf %39, %37 : vector<8x8xf32>
    %cst_24 = arith.constant 2.000000e+00 : f32
    %41 = vector.broadcast %cst_24 : f32 to vector<8x8xf32>
    %42 = arith.mulf %41, %40 : vector<8x8xf32>
    %cst_25 = arith.constant -5.000000e-01 : f32
    %43 = vector.broadcast %cst_25 : f32 to vector<8x8xf32>
    %44 = arith.mulf %43, %25 : vector<8x8xf32>
    %45 = arith.mulf %44, %25 : vector<8x8xf32>
    %46 = arith.subf %45, %23 : vector<8x8xf32>
    %47 = arith.subf %46, %42 : vector<8x8xf32>
    %cst_26 = arith.constant dense<0.000000e+00> : vector<8xf32>
    %48 = vector.multi_reduction <add>, %47, %cst_26 [1] : vector<8x8xf32> to vector<8xf32>
    %49 = vector.shape_cast %48 : vector<8xf32> to vector<8x1xf32>
    %cst_27 = arith.constant 7.35150814 : f32
    %50 = vector.broadcast %cst_27 : f32 to vector<8x1xf32>
    %51 = arith.subf %49, %50 : vector<8x1xf32>
    %52 = math.tanh %27 : vector<8x8xf32>
    %cst_28 = arith.constant 1.000000e+00 : f32
    %53 = vector.broadcast %cst_28 : f32 to vector<8x8xf32>
    %54 = arith.mulf %53, %52 : vector<8x8xf32>
    %55 = vector.shape_cast %51 : vector<8x1xf32> to vector<8x1xf32>
    %56 = vector.broadcast %55 : vector<8x1xf32> to vector<8x8xf32>
    %57 = tpu.concatenate %54, %56 in 1 : vector<8x8xf32>, vector<8x8xf32> -> vector<8x16xf32>
    %c0_29 = arith.constant 0 : index
    %c0_30 = arith.constant 0 : index
    %58 = vector.load %arg9[%c0_29, %c0_30] : memref<8x16xf32, #tpu.memory_space<vmem>>, vector<8x16xf32>
    tpu.vector_store %arg9[%c0_29, %c0_30], %57 {strides = array<i32>} : memref<8x16xf32, #tpu.memory_space<vmem>>, vector<8x16xf32>,
    return
  }
  func.func @transform_0(%arg0: i32) -> (i32, i32) {
    %c0_i32 = arith.constant 0 : i32
    %c0_i32_0 = arith.constant 0 : i32
    return %arg0, %c0_i32 : i32, i32
  }
  func.func @transform_1(%arg0: i32) -> (i32, i32) {
    %c0_i32 = arith.constant 0 : i32
    %c0_i32_0 = arith.constant 0 : i32
    %c0_i32_1 = arith.constant 0 : i32
    return %c0_i32, %c0_i32_0 : i32, i32
  }
  func.func @transform_2(%arg0: i32) -> (i32, i32) {
    %c0_i32 = arith.constant 0 : i32
    %c0_i32_0 = arith.constant 0 : i32
    %c0_i32_1 = arith.constant 0 : i32
    return %c0_i32, %c0_i32_0 : i32, i32
  }
  func.func @transform_3(%arg0: i32) -> (i32, i32) {
    %c0_i32 = arith.constant 0 : i32
    %c0_i32_0 = arith.constant 0 : i32
    %c0_i32_1 = arith.constant 0 : i32
    return %c0_i32, %c0_i32_0 : i32, i32
  }
  func.func @transform_4(%arg0: i32) -> (i32, i32) {
    %c0_i32 = arith.constant 0 : i32
    %c0_i32_0 = arith.constant 0 : i32
    %c0_i32_1 = arith.constant 0 : i32
    return %c0_i32, %c0_i32_0 : i32, i32
  }
  func.func @transform_5(%arg0: i32) -> (i32, i32) {
    %c0_i32 = arith.constant 0 : i32
    %c0_i32_0 = arith.constant 0 : i32
    %c0_i32_1 = arith.constant 0 : i32
    return %c0_i32, %c0_i32_0 : i32, i32
  }
  func.func @transform_6(%arg0: i32) -> (i32, i32) {
    %c0_i32 = arith.constant 0 : i32
    %c0_i32_0 = arith.constant 0 : i32
    %c0_i32_1 = arith.constant 0 : i32
    return %c0_i32, %c0_i32_0 : i32, i32
  }
  func.func @transform_7(%arg0: i32) -> (i32, i32) {
    %c0_i32 = arith.constant 0 : i32
    %c0_i32_0 = arith.constant 0 : i32
    return %arg0, %c0_i32 : i32, i32
  }
  func.func @transform_8(%arg0: i32) -> (i32, i32) {
    %c0_i32 = arith.constant 0 : i32
    %c0_i32_0 = arith.constant 0 : i32
    return %arg0, %c0_i32 : i32, i32
  }
}

</mosaic_0001>

<llo_original>
// kernel: tpu_custom_call.1
$region0: #{tpu_custom_call.1}
  #allocation0 [shape = 'u32[]', space=smem, size = 0x4, offset = 0x4, fixed_abs, tag = 'smem constant byte address 0x4 - core index']
  #allocation1 [shape = 'u32[144,128]{1,0:T(1,128)}', space=vmem, size = 0x12000, scoped, tag = 'internal scratch']
  %s0 = inlined_call_operand.vmem [shape: f32[8,32], index: 0, kind: input, shape index: {}]
  %s1 = inlined_call_operand.vmem [shape: bf16[32,64], index: 1, kind: input, shape index: {}]
  %s2 = inlined_call_operand.vmem [shape: f32[1,64], index: 2, kind: input, shape index: {}]
  %s3 = inlined_call_operand.vmem [shape: bf16[64,8], index: 3, kind: input, shape index: {}]
  %s4 = inlined_call_operand.vmem [shape: f32[1,8], index: 4, kind: input, shape index: {}]
  %s5 = inlined_call_operand.vmem [shape: bf16[64,8], index: 5, kind: input, shape index: {}]
  %s6 = inlined_call_operand.vmem [shape: f32[1,8], index: 6, kind: input, shape index: {}]
  %s7 = inlined_call_operand.vmem [shape: f32[8,8], index: 7, kind: input, shape index: {}]
  %s8 = inlined_call_operand.hbm [shape: f32[8,16], index: 8, kind: output, shape index: {}]
  %s9 = sld [smem:[#allocation0]]
  $region42: #{tpu_custom_call.1} parent=0
    _
  %s11 = ssub.s32 1, %s9
  %s12 = scalar_select 0, %s11, %s9
  $region1: #{tpu_custom_call.1} parent=0
    #allocation2 [shape = 'u8[4096]{0}', space=vmem, size = 0x1000, scoped, tag = 'output window, operand 0, single buffered']
    #allocation3 [shape = 's32[1]{0}', space=sflag, size = 0x4, scoped, tag = 'scoped memory for tpu_custom_call.1']
    %13 = vsyncpa [#allocation3], 0
    // Predicated region
    $region2: #{tpu_custom_call.1} parent=1 // pred_check
      _
    $region3: #{tpu_custom_call.1} parent=1 // pred_check_branch
      %15 = sbr.rel (0) target = $region5
    $region4: #{tpu_custom_call.1} parent=1 // pred_region
      _
    $region5: #{tpu_custom_call.1} parent=1 // pred_fallthru
      _
    // Predicated region
    $region6: #{tpu_custom_call.1} parent=1 // pred_check
      _
    $region7: #{tpu_custom_call.1} parent=1 // pred_check_branch
      %17 = sbr.rel (0) target = $region9
    $region8: #{tpu_custom_call.1} parent=1 // pred_region
      _
    $region9: #{tpu_custom_call.1} parent=1 // pred_fallthru
      _
    // Predicated region
    $region10: #{tpu_custom_call.1} parent=1 // pred_check
      _
    $region11: #{tpu_custom_call.1} parent=1 // pred_check_branch
      %19 = sbr.rel (0) target = $region13
    $region12: #{tpu_custom_call.1} parent=1 // pred_region
      _
    $region13: #{tpu_custom_call.1} parent=1 // pred_fallthru
      _
    // Predicated region
    $region14: #{tpu_custom_call.1} parent=1 // pred_check
      _
    $region15: #{tpu_custom_call.1} parent=1 // pred_check_branch
      %21 = sbr.rel (0) target = $region17
    $region16: #{tpu_custom_call.1} parent=1 // pred_region
      _
    $region17: #{tpu_custom_call.1} parent=1 // pred_fallthru
      _
    // Predicated region
    $region18: #{tpu_custom_call.1} parent=1 // pred_check
      _
    $region19: #{tpu_custom_call.1} parent=1 // pred_check_branch
      %23 = sbr.rel (0) target = $region21
    $region20: #{tpu_custom_call.1} parent=1 // pred_region
      _
    $region21: #{tpu_custom_call.1} parent=1 // pred_fallthru
      _
    // Predicated region
    $region22: #{tpu_custom_call.1} parent=1 // pred_check
      _
    $region23: #{tpu_custom_call.1} parent=1 // pred_check_branch
      %25 = sbr.rel (0) target = $region25
    $region24: #{tpu_custom_call.1} parent=1 // pred_region
      _
    $region25: #{tpu_custom_call.1} parent=1 // pred_fallthru
      _
    // Predicated region
    $region26: #{tpu_custom_call.1} parent=1 // pred_check
      _
    $region27: #{tpu_custom_call.1} parent=1 // pred_check_branch
      %27 = sbr.rel (0) target = $region29
    $region28: #{tpu_custom_call.1} parent=1 // pred_region
      _
    $region29: #{tpu_custom_call.1} parent=1 // pred_fallthru
      _
    // Predicated region
    $region30: #{tpu_custom_call.1} parent=1 // pred_check
      _
    $region31: #{tpu_custom_call.1} parent=1 // pred_check_branch
      %29 = sbr.rel (0) target = $region33
    $region32: #{tpu_custom_call.1} parent=1 // pred_region
      _
    $region33: #{tpu_custom_call.1} parent=1 // pred_fallthru
      _
    %v31 = vld [vmem:[%s0] sm:$0xff]
    %v32 = vpack.c.bf16 %v31, %v31
    %v33 = vld [vmem:[%s1] sm:$0xf]
    %v34 = vld [vmem:[%s1 + $0x4] sm:$0xf]
    %v35 = vld [vmem:[%s1 + $0x8] sm:$0xf]
    %v36 = vld [vmem:[%s1 + $0xc] sm:$0xf]
    %v37 = vld [vmem:[%s2] sm:$0x1]
    %v39 = vlaneseq
    %v40 = vshrl.u32 %v39, 7
    %v41 = vsub.s32 0, %v40
    %v42 = vrot.slane %v37, %v41
    %v48 = vunpack.c.l.b16 %v33
    %v49 = vunpack.c.l.b16 %v34
    %v50 = vunpack.c.l.b16 %v35
    %v51 = vunpack.c.l.b16 %v36
    %v52 = vpack.c.b16 %v49, %v48
    %v53 = vpack.c.b16 %v51, %v50
    %vm56 = vcmask 261120
    %v58 = vsel %vm56, %v32, 0
    %60 = vmatprep.subr.bf16.mxu0 0
    %61 = vmatpush1.bf16.msra.mxu0 %v52
    %62 = vmatprep.subr.bf16.mxu0 0
    %63 = vmatpush1.bf16.msra.mxu0 %v53
    %64 = vmatprep.subr.bf16.mxu0 0
    %65 = vmatpush1.bf16.msra.mxu0 0
    %66 = vmatprep.subr.bf16.mxu0 0
    %67 = vmatpush1.bf16.msra.mxu0 0
    %68 = vmatprep.subr.bf16.mxu0 0
    %69 = vmatpush1.bf16.msra.mxu0 0
    %70 = vmatprep.subr.bf16.mxu0 0
    %71 = vmatpush1.bf16.msra.mxu0 0
    %72 = vmatprep.subr.bf16.mxu0 0
    %73 = vmatpush1.bf16.msra.mxu0 0
    %74 = vmatprep.subr.bf16.mxu0 0
    %75 = vmatpush1.bf16.msra.mxu0 0
    %76 = vmatprep.subr.bf16.mxu0 0
    %77 = vmatpush1.bf16.msra.mxu0 0
    %78 = vmatprep.subr.bf16.mxu0 0
    %79 = vmatpush1.bf16.msra.mxu0 0
    %80 = vmatprep.subr.bf16.mxu0 0
    %81 = vmatpush1.bf16.msra.mxu0 0
    %82 = vmatprep.subr.bf16.mxu0 0
    %83 = vmatpush1.bf16.msra.mxu0 0
    %84 = vmatprep.subr.bf16.mxu0 0
    %85 = vmatpush1.bf16.msra.mxu0 0
    %86 = vmatprep.subr.bf16.mxu0 0
    %87 = vmatpush1.bf16.msra.mxu0 0
    %88 = vmatprep.subr.bf16.mxu0 0
    %89 = vmatpush1.bf16.msra.mxu0 0
    %90 = vmatprep.subr.bf16.mxu0 0
    %91 = vmatpush1.bf16.msra.mxu0 0
    %92 = vmatprep.mubr.bf16.mxu0 0
    %93 = vmatmul.mubr.bf16.gmra.mrb[0].mxu0 %v58
    %v94 = vpop.f32.mrb[0].mxu0
    %v95 = vadd.f32 %v42, %v94
    %v96 = vpop.f32.mrb[0].mxu0
    %v97 = vpop.f32.mrb[0].mxu0
    %v98 = vpop.f32.mrb[0].mxu0
    %99 = vdwg.mxu0
    %v100 = vmax.f32 %v95, 0.0
    %v101 = vpack.c.bf16 %v100, %v100
    %v102 = vld [vmem:[%s3] sm:$0xf]
    %v103 = vld [vmem:[%s3 + $0x4] sm:$0xf]
    %v104 = vld [vmem:[%s3 + $0x8] sm:$0xf]
    %v105 = vld [vmem:[%s3 + $0xc] sm:$0xf]
    %v106 = vld [vmem:[%s3 + $0x10] sm:$0xf]
    %v107 = vld [vmem:[%s3 + $0x14] sm:$0xf]
    %v108 = vld [vmem:[%s3 + $0x18] sm:$0xf]
    %v109 = vld [vmem:[%s3 + $0x1c] sm:$0xf]
    %v110 = vld [vmem:[%s4] sm:$0x1]
    %v112 = vlaneseq
    %v113 = vshrl.u32 %v112, 7
    %v114 = vsub.s32 0, %v113
    %v115 = vrot.slane %v110, %v114
    %v125 = vunpack.c.l.b16 %v102
    %v126 = vunpack.c.l.b16 %v103
    %v127 = vunpack.c.l.b16 %v104
    %v128 = vunpack.c.l.b16 %v105
    %v129 = vunpack.c.l.b16 %v106
    %v130 = vunpack.c.l.b16 %v107
    %v131 = vunpack.c.l.b16 %v108
    %v132 = vunpack.c.l.b16 %v109
    %v133 = vpack.c.b16 %v126, %v125
    %v134 = vpack.c.b16 %v128, %v127
    %v135 = vpack.c.b16 %v130, %v129
    %v136 = vpack.c.b16 %v132, %v131
    %vm141 = vcmask 523264
    %v143 = vsel %vm141, %v101, 0
    %145 = vmatprep.subr.bf16.mxu0 0
    %146 = vmatpush1.bf16.msra.mxu0 %v133
    %147 = vmatprep.subr.bf16.mxu0 0
    %148 = vmatpush1.bf16.msra.mxu0 %v134
    %149 = vmatprep.subr.bf16.mxu0 0
    %150 = vmatpush1.bf16.msra.mxu0 %v135
    %151 = vmatprep.subr.bf16.mxu0 0
    %152 = vmatpush1.bf16.msra.mxu0 %v136
    %153 = vmatprep.subr.bf16.mxu0 0
    %154 = vmatpush1.bf16.msra.mxu0 0
    %155 = vmatprep.subr.bf16.mxu0 0
    %156 = vmatpush1.bf16.msra.mxu0 0
    %157 = vmatprep.subr.bf16.mxu0 0
    %158 = vmatpush1.bf16.msra.mxu0 0
    %159 = vmatprep.subr.bf16.mxu0 0
    %160 = vmatpush1.bf16.msra.mxu0 0
    %161 = vmatprep.subr.bf16.mxu0 0
    %162 = vmatpush1.bf16.msra.mxu0 0
    %163 = vmatprep.subr.bf16.mxu0 0
    %164 = vmatpush1.bf16.msra.mxu0 0
    %165 = vmatprep.subr.bf16.mxu0 0
    %166 = vmatpush1.bf16.msra.mxu0 0
    %167 = vmatprep.subr.bf16.mxu0 0
    %168 = vmatpush1.bf16.msra.mxu0 0
    %169 = vmatprep.subr.bf16.mxu0 0
    %170 = vmatpush1.bf16.msra.mxu0 0
    %171 = vmatprep.subr.bf16.mxu0 0
    %172 = vmatpush1.bf16.msra.mxu0 0
    %173 = vmatprep.subr.bf16.mxu0 0
    %174 = vmatpush1.bf16.msra.mxu0 0
    %175 = vmatprep.subr.bf16.mxu0 0
    %176 = vmatpush1.bf16.msra.mxu0 0
    %177 = vmatprep.mubr.bf16.mxu0 0
    %178 = vmatmul.mubr.bf16.gmra.mrb[0].mxu0 %v143
    %v179 = vpop.f32.mrb[0].mxu0
    %v180 = vadd.f32 %v115, %v179
    %v181 = vpop.f32.mrb[0].mxu0
    %v182 = vpop.f32.mrb[0].mxu0
    %v183 = vpop.f32.mrb[0].mxu0
    %184 = vdwg.mxu0
    %v185 = vld [vmem:[%s5] sm:$0xf]
    %v186 = vld [vmem:[%s5 + $0x4] sm:$0xf]
    %v187 = vld [vmem:[%s5 + $0x8] sm:$0xf]
    %v188 = vld [vmem:[%s5 + $0xc] sm:$0xf]
    %v189 = vld [vmem:[%s5 + $0x10] sm:$0xf]
    %v190 = vld [vmem:[%s5 + $0x14] sm:$0xf]
    %v191 = vld [vmem:[%s5 + $0x18] sm:$0xf]
    %v192 = vld [vmem:[%s5 + $0x1c] sm:$0xf]
    %v193 = vld [vmem:[%s6] sm:$0x1]
    %v195 = vlaneseq
    %v196 = vshrl.u32 %v195, 7
    %v197 = vsub.s32 0, %v196
    %v198 = vrot.slane %v193, %v197
    %v208 = vunpack.c.l.b16 %v185
    %v209 = vunpack.c.l.b16 %v186
    %v210 = vunpack.c.l.b16 %v187
    %v211 = vunpack.c.l.b16 %v188
    %v212 = vunpack.c.l.b16 %v189
    %v213 = vunpack.c.l.b16 %v190
    %v214 = vunpack.c.l.b16 %v191
    %v215 = vunpack.c.l.b16 %v192
    %v216 = vpack.c.b16 %v209, %v208
    %v217 = vpack.c.b16 %v211, %v210
    %v218 = vpack.c.b16 %v213, %v212
    %v219 = vpack.c.b16 %v215, %v214
    %224 = vmatprep.subr.bf16.mxu0 0
    %225 = vmatpush1.bf16.msra.mxu0 %v216
    %226 = vmatprep.subr.bf16.mxu0 0
    %227 = vmatpush1.bf16.msra.mxu0 %v217
    %228 = vmatprep.subr.bf16.mxu0 0
    %229 = vmatpush1.bf16.msra.mxu0 %v218
    %230 = vmatprep.subr.bf16.mxu0 0
    %231 = vmatpush1.bf16.msra.mxu0 %v219
    %232 = vmatprep.subr.bf16.mxu0 0
    %233 = vmatpush1.bf16.msra.mxu0 0
    %234 = vmatprep.subr.bf16.mxu0 0
    %235 = vmatpush1.bf16.msra.mxu0 0
    %236 = vmatprep.subr.bf16.mxu0 0
    %237 = vmatpush1.bf16.msra.mxu0 0
    %238 = vmatprep.subr.bf16.mxu0 0
    %239 = vmatpush1.bf16.msra.mxu0 0
    %240 = vmatprep.subr.bf16.mxu0 0
    %241 = vmatpush1.bf16.msra.mxu0 0
    %242 = vmatprep.subr.bf16.mxu0 0
    %243 = vmatpush1.bf16.msra.mxu0 0
    %244 = vmatprep.subr.bf16.mxu0 0
    %245 = vmatpush1.bf16.msra.mxu0 0
    %246 = vmatprep.subr.bf16.mxu0 0
    %247 = vmatpush1.bf16.msra.mxu0 0
    %248 = vmatprep.subr.bf16.mxu0 0
    %249 = vmatpush1.bf16.msra.mxu0 0
    %250 = vmatprep.subr.bf16.mxu0 0
    %251 = vmatpush1.bf16.msra.mxu0 0
    %252 = vmatprep.subr.bf16.mxu0 0
    %253 = vmatpush1.bf16.msra.mxu0 0
    %254 = vmatprep.subr.bf16.mxu0 0
    %255 = vmatpush1.bf16.msra.mxu0 0
    %256 = vmatprep.mubr.bf16.mxu0 0
    %257 = vmatmul.mubr.bf16.gmra.mrb[0].mxu0 %v143
    %v258 = vpop.f32.mrb[0].mxu0
    %v259 = vadd.f32 %v198, %v258
    %v260 = vpop.f32.mrb[0].mxu0
    %v261 = vpop.f32.mrb[0].mxu0
    %v262 = vpop.f32.mrb[0].mxu0
    %263 = vdwg.mxu0
    %v264 = vmax.f32 %v259, -20.0
    %v265 = vmin.f32 %v264, 2.0
    %v266 = vmul.f32 %v265, 1.442695
    %v267 = vpow.pop %v266
    %v268 = vld [vmem:[%s7] sm:$0xff]
    %v269 = vmul.f32 %v267, %v268
    %v270 = vadd.f32 %v180, %v269
    %v271 = vmul.f32 %v270, -2.0
    %v272 = vmax.f32 %v271, 0.0
    %v273 = vand.u32 2147483647, %v271
    %v274 = vsub.f32 0.0, %v273
    %v275 = vmul.f32 %v274, 1.442695
    %v276 = vpow.pop %v275
    %v277 = vadd.f32 %v276, 1.0
    %v278 = vlog2.pop %v277
    %v279 = vmul.f32 %v278, 0.6931472
    %v280 = vmul.f32 -0.5, %v276
    %v281 = vadd.f32 %v280, 1.0
    %v282 = vmul.f32 %v281, %v276
    %v283 = vand.u32 2147483647, %v276
    %vm284 = vcmp.lt.f32.partialorder %v283, 0.0004427343
    %v285 = vsel %vm284, %v282, %v279
    %v286 = vadd.f32 %v272, %v285
    %v287 = vsub.f32 0.6931472, %v270
    %v288 = vsub.f32 %v287, %v286
    %v289 = vmul.f32 %v288, 2.0
    %v290 = vmul.f32 %v268, -0.5
    %v291 = vmul.f32 %v290, %v268
    %v292 = vsub.f32 %v291, %v265
    %v293 = vsub.f32 %v292, %v289
    %vm294 = vcmask 64512
    %v295 = vsel %vm294, %v293, 0.0
    %296 = vadd.xlane.f32.xlu0 %v295
    %v297 = vpop.xlane.xlu0 %296
    %v298 = vsub.f32 %v297, 7.351508
    %v299 = vtanh.pop %v270
    %v300 = vsel %vm294, %v299, %v298
    %vm301 = vcmask 130048
    %302 = vst.msk [vmem:[#allocation2] sm:$0xff] %vm301, %v300
    // Predicated region
    $region34: #{tpu_custom_call.1} parent=1 // pred_check
      _
    $region35: #{tpu_custom_call.1} parent=1 // pred_check_branch
      %304 = sbr.rel (0) target = $region37
    $region36: #{tpu_custom_call.1} parent=1 // pred_region
      %s306 = ssub.s32 128, 128
      %307 = vsyncadd [#allocation3], %s306
      %s309 = sshll.u32 [#allocation2], 4
      %s310 = int_to_ptr.vmem [resolvable:$true] %s309
      %312 = dma.vmem_to_hbm [thread:$0]  %s310, 128, %s8, [#allocation3]
    $region37: #{tpu_custom_call.1} parent=1 // pred_fallthru
      _
    // Predicated region
    $region38: #{tpu_custom_call.1} parent=1 // pred_check
      _
    $region39: #{tpu_custom_call.1} parent=1 // pred_check_branch
      %314 = sbr.rel (0) target = $region41
    $region40: #{tpu_custom_call.1} parent=1 // pred_region
      %315 = dma.done [#allocation3], 128
    $region41: #{tpu_custom_call.1} parent=1 // pred_fallthru
      _
    %316 = vsyncpa [#allocation3], 1

</llo_original>
